<compile_context>
chip_gen: v7x
topology: tpu7x:2x2x1
jax: 0.10.0
libtpu: 0.0.40
codegen_flags: <defaults>
</compile_context>

<pallas_src>
import jax
import jax.numpy as jnp
from jax.experimental import pallas as pl
from jax.experimental.pallas import tpu as pltpu


# ----------------------------- Pallas kernel --------------------------------
def _rollout_kernel(
    xtax_ref,   # [1, F+N, F]  rows :F = X_tilde_t, rows F: = (A1@A_rec) @ x_t
    slab_ref,   # [3F+4, 6F]   static params: rows :F wg, row F bg, rows F+1:2F+1 h0, rest sp
    out_ref,    # [1, N, 8]    col 0 = linear(h1), cols 1..4 = tanh(h1), cols 5..7 = pad
    xh_ref,     # VMEM scratch [2F, F]: rows :F = X_tilde staging, rows F: = carried GRU hidden W
):
    f32 = jnp.float32
    F = xh_ref.shape[1]
    N = out_ref.shape[1]

    # ---- unpack the resident static slab (static slices of a VMEM value: free-ish) ----
    slab = slab_ref[...]
    wg = slab[:F, :]                              # [F, 6F]  [Wir|Wiz|Win|Whr|Whz|Whn]
    bg = slab[F:F + 1, :4 * F]                    # [1, 4F]  [br | bz | bin | bhn]
    h0 = slab[F + 1:2 * F + 1, :F]                # [F, F]   EvolveGCN-H initial weight
    sp = slab[2 * F + 1:, :4]                     # [F+3, 4]
    w1 = sp[:F, :]                                # [F, 4]   conv1 weight
    b1 = sp[F:F + 1, :]                           # [1, 4]   conv1 bias
    wl = sp[F + 1:F + 2, :]                       # [1, 4]   Linear(4,1) weight row
    bl = sp[F + 2:F + 3, 0:1]                     # [1, 1]   Linear bias

    t = pl.program_id(0)

    @pl.when(t == 0)
    def _():                                      # GRU hidden starts as the initial weight
        xh_ref[F:, :] = h0

    xtax = xtax_ref[0]                            # [F+N, F]
    xh_ref[:F, :] = xtax[:F, :]                   # stage X_tilde_t above the carried hidden
    ax = xtax[F:, :]                              # [N, F] = A_comb @ x_t

    # ---- EvolveGCN-H weight evolution: ONE MXU matmul for all six GRU gate pre-activations ----
    xh = xh_ref[...]                              # [2F, F] (rows F: still hold W_{t-1})
    h_old = xh[F:, :]
    g = jnp.dot(xh, wg, preferred_element_type=f32)        # [2F, 6F]
    gi = g[:F, :3 * F]                            # X_tilde @ [Wir|Wiz|Win]
    gh = g[F:, 3 * F:]                            # W_{t-1} @ [Whr|Whz|Whn]

    br = bg[:, :F]
    bz = bg[:, F:2 * F]
    bi_n = bg[:, 2 * F:3 * F]
    bh_n = bg[:, 3 * F:4 * F]

    # (br/bz are the merged b_ih+b_hh gate biases; only the candidate gate needs separate biases)
    r = jax.nn.sigmoid(gi[:, :F] + gh[:, :F] + br)
    z = jax.nn.sigmoid(gi[:, F:2 * F] + gh[:, F:2 * F] + bz)
    n = jnp.tanh(gi[:, 2 * F:] + bi_n + r * (gh[:, 2 * F:] + bh_n))
    w_new = (1.0 - z) * n + z * h_old             # [F, F] evolved GCN weight
    xh_ref[F:, :] = w_new                         # carry state to next grid step

    # ---- folded propagation: A1 @ (A_rec @ (x @ W) @ W1) + b1 == ax @ (W @ W1) + b1 ----
    w_eff = jnp.dot(w_new, w1, preferred_element_type=f32)      # [F, 4]
    h1 = jnp.dot(ax, w_eff, preferred_element_type=f32) + b1    # [N, 4]

    out_vals = jnp.tanh(h1)                                     # out = h.tanh()
    # Linear(4,1) on pre-tanh h1: K=4,N=1 matmul is pure MXU overhead -> VPU mul + lane reduce.
    h_lin = jnp.sum(h1 * wl, axis=-1, keepdims=True) + bl       # [N, 1]

    # direct lane-slice stores (no concatenate materialization)
    out_ref[0, :, 0:1] = h_lin
    out_ref[0, :, 1:5] = out_vals
    out_ref[0, :, 5:8] = jnp.zeros((N, 3), f32)


def fused_rollout(xtax, slab, n_nodes, n_feat):
    """One pallas_call over all T steps; recurrent weight lives in VMEM scratch."""
    T = xtax.shape[0]
    F, N = n_feat, n_nodes
    packed = pl.pallas_call(
        _rollout_kernel,
        out_shape=jax.ShapeDtypeStruct((T, N, 8), jnp.float32),
        grid_spec=pltpu.PrefetchScalarGridSpec(
            num_scalar_prefetch=0,
            grid=(T,),
            in_specs=[
                pl.BlockSpec((1, F + N, F), lambda t: (t, 0, 0)),      # per-step block
                pl.BlockSpec(slab.shape, lambda t: (0, 0)),            # resident static slab
            ],
            out_specs=pl.BlockSpec((1, N, 8), lambda t: (t, 0, 0)),
            scratch_shapes=[pltpu.VMEM((2 * F, F), jnp.float32)],
        ),
        compiler_params=pltpu.CompilerParams(
            dimension_semantics=("arbitrary",)),                       # time axis carries state
    )(xtax, slab)
    return packed[:, :, 0:1], packed[:, :, 1:5]                        # (h, out) per step


# ------------------------------- JAX glue ------------------------------------
def gcn_norm_dense(edge_index, edge_weight, num_nodes, fill_value):
    """Dense D^-1/2 (A + fill*I) D^-1/2.
    # TODO(synk): assumes edge_index has no explicit self-loops (else fill*I double-counts)."""
    src, dst = edge_index[0], edge_index[1]
    a = jnp.zeros((num_nodes, num_nodes), jnp.float32)
    a = a.at[dst, src].add(edge_weight.astype(jnp.float32))
    a = a + fill_value * jnp.eye(num_nodes, dtype=jnp.float32)
    deg = a.sum(axis=1)
    dinv = jnp.where(deg > 0, 1.0 / jnp.sqrt(deg), 0.0)
    return dinv[:, None] * a * dinv[None, :]


def topk_pool(x, p):
    """PyG TopKPooling: score = (x.p)/||p||, keep top-k rows scaled by tanh(score).
    # TODO(synk): hardcodes k = F (valid for ratio = F/N with these shapes)."""
    score = x @ p / jnp.linalg.norm(p)
    k = x.shape[1]
    vals, perm = jax.lax.top_k(score, k)   # data-dependent selection stays in plain JAX
    return x[perm] * jnp.tanh(vals)[:, None]


def pack_static_slab(params):
    """Pack every parameter tensor into ONE [3F+4, 6F] f32 slab (single resident DMA)."""
    f = params["h0"].shape[0]
    wide = 6 * f
    wg = jnp.concatenate(
        [params["wir"], params["wiz"], params["win"],
         params["whr"], params["whz"], params["whn"]], axis=1)                # [F, 6F]
    bg = jnp.concatenate(
        [params["br"], params["bz"], params["bin_"], params["bhn"]], axis=1)  # [1, 4F]
    sp = jnp.concatenate(
        [params["w1"], params["b1"], params["wl"].T,
         jnp.pad(params["bl"], ((0, 0), (0, 3)))], axis=0)                    # [F+3, 4]
    slab = jnp.concatenate(
        [wg,
         jnp.pad(bg, ((0, 0), (0, wide - 4 * f))),
         jnp.pad(params["h0"], ((0, 0), (0, wide - f))),
         jnp.pad(sp, ((0, 0), (0, wide - 4)))], axis=0)                       # [3F+4, 6F]
    assert slab.shape == (3 * f + 4, wide)
    return slab


def init_params(key, node_features):
    f = node_features
    ks = jax.random.split(key, 16)

    def u(k, shape, scale):
        return jax.random.uniform(k, shape, jnp.float32, -scale, scale)

    s = 1.0 / jnp.sqrt(jnp.float32(f))
    return dict(
        pool_p=u(ks[0], (f,), 1.0),                 # TopKPooling projection
        h0=u(ks[1], (f, f), s),                     # EvolveGCNH initial_weight (GRU hidden)
        wir=u(ks[2], (f, f), s), wiz=u(ks[3], (f, f), s), win=u(ks[4], (f, f), s),
        whr=u(ks[5], (f, f), s), whz=u(ks[6], (f, f), s), whn=u(ks[7], (f, f), s),
        br=u(ks[8], (1, f), s), bz=u(ks[9], (1, f), s),
        bin_=u(ks[10], (1, f), s), bhn=u(ks[11], (1, f), s),
        w1=u(ks[12], (f, 4), s),                    # GCNConv(F, 4) weight (pre-transposed)
        b1=jnp.zeros((1, 4), jnp.float32),          # GCNConv bias
        wl=u(ks[13], (4, 1), 0.5),                  # Linear(4, 1) weight (pre-transposed)
        bl=u(ks[14], (1, 1), 0.5),                  # Linear bias
    )


def recurrent_gcn1_rollout(params, x_all, edge_index, edge_weight):
    """Apply RecurrentGCN1.forward for T consecutive time steps on a static graph,
    carrying the EvolveGCN-H evolved weight across steps inside one Pallas kernel."""
    T, n, f = x_all.shape

    # --- graph-static glue: computed once, hoisted out of the recurrence ---
    a_rec = gcn_norm_dense(edge_index, edge_weight, n, fill_value=2.0)      # improved, weighted
    a1 = gcn_norm_dense(edge_index, jnp.ones_like(edge_weight), n, fill_value=1.0)
    a_comb = a1 @ a_rec                                                     # fold both propagations
    slab = pack_static_slab(params)

    # --- per-step glue, batched over T with single XLA ops ---
    xt_all = jax.vmap(lambda xi: topk_pool(xi, params["pool_p"]))(x_all)    # [T, F, F]
    ax_all = jnp.einsum("nm,tmf->tnf", a_comb, x_all)                       # [T, N, F]
    xtax = jnp.concatenate([xt_all, ax_all], axis=1)                        # [T, F+N, F]

    return fused_rollout(xtax, slab, n, f)                                  # ([T,N,1], [T,N,4])


def recurrent_gcn1_forward(params, x, edge_index, edge_weight):
    """Single-step forward, exactly matching the PyTorch module's forward signature."""
    h, out = recurrent_gcn1_rollout(params, x[None], edge_index, edge_weight)
    return h[0], out[0]


# --------------------------------- main --------------------------------------
if __name__ == "__main__":
    T, NODE_COUNT, NODE_FEATURES = 8, 16, 8

    key = jax.random.PRNGKey(0)
    k_x, k_w, k_p = jax.random.split(key, 3)

    # node features for T time steps
    x_all = jax.random.normal(k_x, (T, NODE_COUNT, NODE_FEATURES), jnp.float32)

    # deterministic bidirectional ring graph (no explicit self-loops)
    src = jnp.arange(NODE_COUNT, dtype=jnp.int32)
    dst = (src + 1) % NODE_COUNT
    edge_index = jnp.stack([jnp.concatenate([src, dst]),
                            jnp.concatenate([dst, src])])                   # [2, 32]
    edge_weight = jnp.abs(jax.random.normal(k_w, (edge_index.shape[1],), jnp.float32)) + 0.5

    params = init_params(k_p, NODE_FEATURES)

    # launch-amortized multi-step rollout (one pallas_call for all T steps)
    rollout = jax.jit(recurrent_gcn1_rollout)
    h_all, out_all = rollout(params, x_all, edge_index, edge_weight)
    jax.block_until_ready((h_all, out_all))
    assert h_all.shape == (T, NODE_COUNT, 1) and out_all.shape == (T, NODE_COUNT, 4)
    assert jnp.all(jnp.isfinite(h_all)) and jnp.all(jnp.isfinite(out_all))

    # single-step call (T=1) matching the original module forward
    h, out = recurrent_gcn1_forward(params, x_all[0], edge_index, edge_weight)
    jax.block_until_ready((h, out))
    assert h.shape == (NODE_COUNT, 1) and out.shape == (NODE_COUNT, 4)
    assert jnp.all(jnp.isfinite(h)) and jnp.all(jnp.isfinite(out))

    print("KERNEL_OK")
</pallas_src>

<mosaic_0001>
module attributes {stable_mosaic.version = 11 : i64} {
  func.func private @main(%arg0: i32) attributes {dimension_semantics = [#tpu.dimension_semantics<core_parallel>], iteration_bounds = array<i64: 2>, tpu.core_type = #tpu.core_type<sc_scalar_subcore>, window_params = []} {
    return
  }
}

module attributes {stable_mosaic.version = 11 : i64} {
  func.func private @main(%arg0: i32) attributes {dimension_semantics = [#tpu.dimension_semantics<core_parallel>], iteration_bounds = array<i64: 2>, tpu.core_type = #tpu.core_type<sc_scalar_subcore>, window_params = []} {
    return
  }
}

module attributes {stable_mosaic.version = 11 : i64} {
  func.func @_rollout_kernel(%arg0: i32, %arg1: memref<1x24x8xf32, #tpu.memory_space<vmem>>, %arg2: memref<28x48xf32, #tpu.memory_space<vmem>>, %arg3: memref<1x16x8xf32, #tpu.memory_space<vmem>>, %arg4: memref<16x8xf32, #tpu.memory_space<vmem>>) attributes {dimension_semantics = [#tpu.dimension_semantics<arbitrary>], iteration_bounds = array<i64: 8>, scalar_prefetch = 0 : i64, scratch_operands = 1 : i64, tpu.core_type = #tpu.core_type<tc>, window_params = [{transform_indices = @transform_0, window_bounds = array<i64: 1, 24, 8>}, {pipeline_mode = #tpu.pipeline_mode<synchronous>, transform_indices = @transform_1, window_bounds = array<i64: 28, 48>}, {transform_indices = @transform_2, window_bounds = array<i64: 1, 16, 8>}]} {
    %c0 = arith.constant 0 : index
    %c0_0 = arith.constant 0 : index
    %0 = vector.load %arg2[%c0, %c0_0] : memref<28x48xf32, #tpu.memory_space<vmem>>, vector<28x48xf32>
    %1 = vector.extract_strided_slice %0 {offsets = [0, 0], sizes = [8, 48], strides = [1, 1]} : vector<28x48xf32> to vector<8x48xf32>
    %2 = vector.extract_strided_slice %0 {offsets = [8, 0], sizes = [1, 32], strides = [1, 1]} : vector<28x48xf32> to vector<1x32xf32>
    %3 = vector.extract_strided_slice %0 {offsets = [9, 0], sizes = [8, 8], strides = [1, 1]} : vector<28x48xf32> to vector<8x8xf32>
    %4 = vector.extract_strided_slice %0 {offsets = [17, 0], sizes = [11, 4], strides = [1, 1]} : vector<28x48xf32> to vector<11x4xf32>
    %5 = vector.extract_strided_slice %4 {offsets = [0, 0], sizes = [8, 4], strides = [1, 1]} : vector<11x4xf32> to vector<8x4xf32>
    %6 = vector.extract_strided_slice %4 {offsets = [8, 0], sizes = [1, 4], strides = [1, 1]} : vector<11x4xf32> to vector<1x4xf32>
    %7 = vector.extract_strided_slice %4 {offsets = [9, 0], sizes = [1, 4], strides = [1, 1]} : vector<11x4xf32> to vector<1x4xf32>
    %8 = vector.extract_strided_slice %4 {offsets = [10, 0], sizes = [1, 1], strides = [1, 1]} : vector<11x4xf32> to vector<1x1xf32>
    %c0_i32 = arith.constant 0 : i32
    %9 = arith.cmpi eq, %arg0, %c0_i32 : i32
    %10 = arith.extui %9 : i1 to i32
    %c0_i32_1 = arith.constant 0 : i32
    %11 = arith.cmpi ne, %10, %c0_i32_1 : i32
    scf.if %11 {
      %c8_24 = arith.constant 8 : index
      %c0_25 = arith.constant 0 : index
      %82 = vector.load %arg4[%c8_24, %c0_25] : memref<16x8xf32, #tpu.memory_space<vmem>>, vector<8x8xf32>
      tpu.vector_store %arg4[%c8_24, %c0_25], %3 {strides = array<i32>} : memref<16x8xf32, #tpu.memory_space<vmem>>, vector<8x8xf32>,
    } else {
    }
    %c0_2 = arith.constant 0 : index
    %c0_3 = arith.constant 0 : index
    %c0_4 = arith.constant 0 : index
    %12 = vector.load %arg1[%c0_2, %c0_3, %c0_4] : memref<1x24x8xf32, #tpu.memory_space<vmem>>, vector<1x24x8xf32>
    %13 = vector.shape_cast %12 : vector<1x24x8xf32> to vector<24x8xf32>
    %14 = vector.extract_strided_slice %13 {offsets = [0, 0], sizes = [8, 8], strides = [1, 1]} : vector<24x8xf32> to vector<8x8xf32>
    %c0_5 = arith.constant 0 : index
    %c0_6 = arith.constant 0 : index
    %15 = vector.load %arg4[%c0_5, %c0_6] : memref<16x8xf32, #tpu.memory_space<vmem>>, vector<8x8xf32>
    tpu.vector_store %arg4[%c0_5, %c0_6], %14 {strides = array<i32>} : memref<16x8xf32, #tpu.memory_space<vmem>>, vector<8x8xf32>,
    %16 = vector.extract_strided_slice %13 {offsets = [8, 0], sizes = [16, 8], strides = [1, 1]} : vector<24x8xf32> to vector<16x8xf32>
    %c0_7 = arith.constant 0 : index
    %c0_8 = arith.constant 0 : index
    %17 = vector.load %arg4[%c0_7, %c0_8] : memref<16x8xf32, #tpu.memory_space<vmem>>, vector<16x8xf32>
    %18 = vector.extract_strided_slice %17 {offsets = [8, 0], sizes = [8, 8], strides = [1, 1]} : vector<16x8xf32> to vector<8x8xf32>
    %cst = arith.constant dense<0.000000e+00> : vector<16x48xf32>
    %19 = tpu.matmul %17, %1, %cst {dimension_numbers = #tpu.dot_dimension_numbers<[1], [0], [0], [1], [0, 0, 1, 1], [], []>} : vector<16x8xf32>, vector<8x48xf32>, vector<16x48xf32> -> vector<16x48xf32>
    %20 = vector.extract_strided_slice %19 {offsets = [0, 0], sizes = [8, 24], strides = [1, 1]} : vector<16x48xf32> to vector<8x24xf32>
    %21 = vector.extract_strided_slice %19 {offsets = [8, 24], sizes = [8, 24], strides = [1, 1]} : vector<16x48xf32> to vector<8x24xf32>
    %22 = vector.extract_strided_slice %2 {offsets = [0, 0], sizes = [1, 8], strides = [1, 1]} : vector<1x32xf32> to vector<1x8xf32>
    %23 = vector.extract_strided_slice %2 {offsets = [0, 8], sizes = [1, 8], strides = [1, 1]} : vector<1x32xf32> to vector<1x8xf32>
    %24 = vector.extract_strided_slice %2 {offsets = [0, 16], sizes = [1, 8], strides = [1, 1]} : vector<1x32xf32> to vector<1x8xf32>
    %25 = vector.extract_strided_slice %2 {offsets = [0, 24], sizes = [1, 8], strides = [1, 1]} : vector<1x32xf32> to vector<1x8xf32>
    %26 = vector.extract_strided_slice %20 {offsets = [0, 0], sizes = [8, 8], strides = [1, 1]} : vector<8x24xf32> to vector<8x8xf32>
    %27 = vector.extract_strided_slice %21 {offsets = [0, 0], sizes = [8, 8], strides = [1, 1]} : vector<8x24xf32> to vector<8x8xf32>
    %28 = arith.addf %26, %27 : vector<8x8xf32>
    %29 = vector.broadcast %22 : vector<1x8xf32> to vector<8x8xf32>
    %30 = arith.addf %28, %29 : vector<8x8xf32>
    %31 = arith.negf %30 : vector<8x8xf32>
    %32 = math.exp %31 : vector<8x8xf32>
    %cst_9 = arith.constant 1.000000e+00 : f32
    %33 = vector.broadcast %cst_9 : f32 to vector<8x8xf32>
    %34 = arith.addf %33, %32 : vector<8x8xf32>
    %35 = arith.divf %33, %34 : vector<8x8xf32>
    %36 = vector.extract_strided_slice %20 {offsets = [0, 8], sizes = [8, 8], strides = [1, 1]} : vector<8x24xf32> to vector<8x8xf32>
    %37 = vector.extract_strided_slice %21 {offsets = [0, 8], sizes = [8, 8], strides = [1, 1]} : vector<8x24xf32> to vector<8x8xf32>
    %38 = arith.addf %36, %37 : vector<8x8xf32>
    %39 = vector.broadcast %23 : vector<1x8xf32> to vector<8x8xf32>
    %40 = arith.addf %38, %39 : vector<8x8xf32>
    %41 = arith.negf %40 : vector<8x8xf32>
    %42 = math.exp %41 : vector<8x8xf32>
    %cst_10 = arith.constant 1.000000e+00 : f32
    %43 = vector.broadcast %cst_10 : f32 to vector<8x8xf32>
    %44 = arith.addf %43, %42 : vector<8x8xf32>
    %45 = arith.divf %43, %44 : vector<8x8xf32>
    %46 = vector.extract_strided_slice %20 {offsets = [0, 16], sizes = [8, 8], strides = [1, 1]} : vector<8x24xf32> to vector<8x8xf32>
    %47 = vector.broadcast %24 : vector<1x8xf32> to vector<8x8xf32>
    %48 = arith.addf %46, %47 : vector<8x8xf32>
    %49 = vector.extract_strided_slice %21 {offsets = [0, 16], sizes = [8, 8], strides = [1, 1]} : vector<8x24xf32> to vector<8x8xf32>
    %50 = vector.broadcast %25 : vector<1x8xf32> to vector<8x8xf32>
    %51 = arith.addf %49, %50 : vector<8x8xf32>
    %52 = arith.mulf %35, %51 : vector<8x8xf32>
    %53 = arith.addf %48, %52 : vector<8x8xf32>
    %54 = math.tanh %53 : vector<8x8xf32>
    %cst_11 = arith.constant 1.000000e+00 : f32
    %55 = vector.broadcast %cst_11 : f32 to vector<8x8xf32>
    %56 = arith.subf %55, %45 : vector<8x8xf32>
    %57 = arith.mulf %56, %54 : vector<8x8xf32>
    %58 = arith.mulf %45, %18 : vector<8x8xf32>
    %59 = arith.addf %57, %58 : vector<8x8xf32>
    %c8 = arith.constant 8 : index
    %c0_12 = arith.constant 0 : index
    %60 = vector.load %arg4[%c8, %c0_12] : memref<16x8xf32, #tpu.memory_space<vmem>>, vector<8x8xf32>
    tpu.vector_store %arg4[%c8, %c0_12], %59 {strides = array<i32>} : memref<16x8xf32, #tpu.memory_space<vmem>>, vector<8x8xf32>,
    %cst_13 = arith.constant dense<0.000000e+00> : vector<8x4xf32>
    %61 = tpu.matmul %59, %5, %cst_13 {dimension_numbers = #tpu.dot_dimension_numbers<[1], [0], [0], [1], [0, 0, 1, 1], [], []>} : vector<8x8xf32>, vector<8x4xf32>, vector<8x4xf32> -> vector<8x4xf32>
    %cst_14 = arith.constant dense<0.000000e+00> : vector<16x4xf32>
    %62 = tpu.matmul %16, %61, %cst_14 {dimension_numbers = #tpu.dot_dimension_numbers<[1], [0], [0], [1], [0, 0, 1, 1], [], []>} : vector<16x8xf32>, vector<8x4xf32>, vector<16x4xf32> -> vector<16x4xf32>
    %63 = vector.broadcast %6 : vector<1x4xf32> to vector<16x4xf32>
    %64 = arith.addf %62, %63 : vector<16x4xf32>
    %65 = math.tanh %64 : vector<16x4xf32>
    %66 = vector.broadcast %7 : vector<1x4xf32> to vector<16x4xf32>
    %67 = arith.mulf %64, %66 : vector<16x4xf32>
    %cst_15 = arith.constant dense<0.000000e+00> : vector<16xf32>
    %68 = vector.multi_reduction <add>, %67, %cst_15 [1] : vector<16x4xf32> to vector<16xf32>
    %69 = vector.shape_cast %68 : vector<16xf32> to vector<16x1xf32>
    %70 = vector.broadcast %8 : vector<1x1xf32> to vector<16x1xf32>
    %71 = arith.addf %69, %70 : vector<16x1xf32>
    %c0_16 = arith.constant 0 : index
    %c0_17 = arith.constant 0 : index
    %c0_18 = arith.constant 0 : index
    %72 = vector.load %arg3[%c0_16, %c0_17, %c0_18] : memref<1x16x8xf32, #tpu.memory_space<vmem>>, vector<1x16x1xf32>
    %73 = vector.shape_cast %72 : vector<1x16x1xf32> to vector<16x1xf32>
    %74 = vector.shape_cast %71 : vector<16x1xf32> to vector<1x16x1xf32>
    tpu.vector_store %arg3[%c0_16, %c0_17, %c0_18], %74 {strides = array<i32>} : memref<1x16x8xf32, #tpu.memory_space<vmem>>, vector<1x16x1xf32>,
    %c0_19 = arith.constant 0 : index
    %c0_20 = arith.constant 0 : index
    %c1 = arith.constant 1 : index
    %75 = vector.load %arg3[%c0_19, %c0_20, %c1] : memref<1x16x8xf32, #tpu.memory_space<vmem>>, vector<1x16x4xf32>
    %76 = vector.shape_cast %75 : vector<1x16x4xf32> to vector<16x4xf32>
    %77 = vector.shape_cast %65 : vector<16x4xf32> to vector<1x16x4xf32>
    tpu.vector_store %arg3[%c0_19, %c0_20, %c1], %77 {strides = array<i32>} : memref<1x16x8xf32, #tpu.memory_space<vmem>>, vector<1x16x4xf32>,
    %cst_21 = arith.constant 0.000000e+00 : f32
    %78 = vector.broadcast %cst_21 : f32 to vector<16x3xf32>
    %c0_22 = arith.constant 0 : index
    %c0_23 = arith.constant 0 : index
    %c5 = arith.constant 5 : index
    %79 = vector.load %arg3[%c0_22, %c0_23, %c5] : memref<1x16x8xf32, #tpu.memory_space<vmem>>, vector<1x16x3xf32>
    %80 = vector.shape_cast %79 : vector<1x16x3xf32> to vector<16x3xf32>
    %81 = vector.shape_cast %78 : vector<16x3xf32> to vector<1x16x3xf32>
    tpu.vector_store %arg3[%c0_22, %c0_23, %c5], %81 {strides = array<i32>} : memref<1x16x8xf32, #tpu.memory_space<vmem>>, vector<1x16x3xf32>,
    return
  }
  func.func @transform_0(%arg0: i32) -> (i32, i32, i32) {
    %c0_i32 = arith.constant 0 : i32
    %c0_i32_0 = arith.constant 0 : i32
    %c0_i32_1 = arith.constant 0 : i32
    return %arg0, %c0_i32, %c0_i32_0 : i32, i32, i32
  }
  func.func @transform_1(%arg0: i32) -> (i32, i32) {
    %c0_i32 = arith.constant 0 : i32
    %c0_i32_0 = arith.constant 0 : i32
    %c0_i32_1 = arith.constant 0 : i32
    return %c0_i32, %c0_i32_0 : i32, i32
  }
  func.func @transform_2(%arg0: i32) -> (i32, i32, i32) {
    %c0_i32 = arith.constant 0 : i32
    %c0_i32_0 = arith.constant 0 : i32
    %c0_i32_1 = arith.constant 0 : i32
    return %arg0, %c0_i32, %c0_i32_0 : i32, i32, i32
  }
}

</mosaic_0001>

<llo_original>
// kernel: recurrent_gcn1_rollout.1
$region0: #{recurrent_gcn1_rollout.1}
  #allocation0 [shape = 'u32[]', space=smem, size = 0x4, offset = 0x4, fixed_abs, tag = 'smem constant byte address 0x4 - core index']
  #allocation1 [shape = 'u32[144,128]{1,0:T(1,128)}', space=vmem, size = 0x12000, scoped, tag = 'internal scratch']
  #allocation2 [shape = 'f32[16,8]{1,0:T(8,128)}', space=vmem, size = 0x2000, scoped, tag = 'scratch operand']
  %s0 = inlined_call_operand.vmem [shape: f32[8,24,8], index: 0, kind: input, shape index: {}]
  %s1 = inlined_call_operand.vmem [shape: f32[28,48], index: 1, kind: input, shape index: {}]
  %s2 = inlined_call_operand.vmem [shape: f32[8,16,8], index: 2, kind: output, shape index: {}]
  %s3 = sld [smem:[#allocation0]]
  $region45: #{recurrent_gcn1_rollout.1} parent=0
    _
  %s5 = ssub.s32 1, %s3
  %s6 = scalar_select 0, %s5, %s3
  loop: start=0, step=1, limit=10
  $region2: #{recurrent_gcn1_rollout.1} parent=0 // loop_pre_header
    _
  $region3: #{recurrent_gcn1_rollout.1} parent=0 // loop_header
    %s8 = sphi 0, %s12
    %p9 = scmp.ge.s32.totalorder %s8, 10
    %s18 = sphi 0, %s20
    %s21 = sphi 0, %s18
    %s22 = sphi 0, %s21
    %s38 = sphi 0, %s22
    %s42 = sphi 0, %s42
    %s44 = sphi 0, %s42
    %s45 = sphi 0, %s44
    %s59 = sphi 0, %s45
    %s65 = sphi 0, %s67
    %s68 = sphi 0, %s65
    %s69 = sphi 0, %s68
    %s85 = sphi 0, %s69
  $region4: #{recurrent_gcn1_rollout.1} parent=0 // loop_header_branch
    %11 = sbr.rel (%p9) target = $region8
  $region5: #{recurrent_gcn1_rollout.1} parent=0 // loop_body
    %s13 = ssub.s32 %s8, 1
    %s14 = ssub.s32 %s8, 2
    %s15 = sadd.s32 %s8, 1
    %s16 = ssub.s32 %s8, %s15
    %p17 = scmp.eq.s32.totalorder %s16, 0
    %s19 = sadd.s32 %s18, 1
    %s20 = scalar_select %p17, %s18, %s19
    %p23 = pneg %p17
    %p24 = scmp.eq.s32.totalorder %s8, 7
    %p25 = por %p23, %p24
    %p26 = scmp.ne.s32.totalorder %s18, %s21
    %p27 = scmp.eq.s32.totalorder %s8, 0
    %p28 = por %p26, %p27
    %p29 = scmp.ne.s32.totalorder %s18, %s21
    %p30 = scmp.eq.s32.totalorder %s13, 7
    %p31 = por %p29, %p30
    %p32 = scmp.ne.s32.totalorder %s21, %s22
    %p33 = scmp.eq.s32.totalorder %s13, 0
    %p34 = por %p32, %p33
    %p35 = scmp.ne.s32.totalorder %s21, %s22
    %p36 = scmp.eq.s32.totalorder %s14, 7
    %p37 = por %p35, %p36
    %p39 = scmp.ne.s32.totalorder %s22, %s38
    %p40 = scmp.eq.s32.totalorder %s14, 0
    %p41 = por %p39, %p40
    %s43 = sadd.s32 %s42, 1
    %p46 = scmp.eq.s32.totalorder %s8, 7
    %p47 = scmp.ne.s32.totalorder %s42, %s44
    %p48 = scmp.eq.s32.totalorder %s8, 0
    %p49 = por %p47, %p48
    %p50 = scmp.ne.s32.totalorder %s42, %s44
    %p51 = scmp.eq.s32.totalorder %s13, 7
    %p52 = por %p50, %p51
    %p53 = scmp.ne.s32.totalorder %s44, %s45
    %p54 = scmp.eq.s32.totalorder %s13, 0
    %p55 = por %p53, %p54
    %p56 = scmp.ne.s32.totalorder %s44, %s45
    %p57 = scmp.eq.s32.totalorder %s14, 7
    %p58 = por %p56, %p57
    %p60 = scmp.ne.s32.totalorder %s45, %s59
    %p61 = scmp.eq.s32.totalorder %s14, 0
    %p62 = por %p60, %p61
    %s63 = ssub.s32 %s8, %s15
    %p64 = scmp.eq.s32.totalorder %s63, 0
    %s66 = sadd.s32 %s65, 1
    %s67 = scalar_select %p64, %s65, %s66
    %p70 = pneg %p64
    %p71 = scmp.eq.s32.totalorder %s8, 7
    %p72 = por %p70, %p71
    %p73 = scmp.ne.s32.totalorder %s65, %s68
    %p74 = scmp.eq.s32.totalorder %s8, 0
    %p75 = por %p73, %p74
    %p76 = scmp.ne.s32.totalorder %s65, %s68
    %p77 = scmp.eq.s32.totalorder %s13, 7
    %p78 = por %p76, %p77
    %p79 = scmp.ne.s32.totalorder %s68, %s69
    %p80 = scmp.eq.s32.totalorder %s13, 0
    %p81 = por %p79, %p80
    %p82 = scmp.ne.s32.totalorder %s68, %s69
    %p83 = scmp.eq.s32.totalorder %s14, 7
    %p84 = por %p82, %p83
    %p86 = scmp.ne.s32.totalorder %s69, %s85
    %p87 = scmp.eq.s32.totalorder %s14, 0
    %p88 = por %p86, %p87
    %p89 = scmp.le.s32.totalorder 1, %s8
    %p90 = scmp.lt.s32.totalorder %s8, 9
    %p91 = pnand %p89, %p90
    %p92 = pneg %p91
    // Predicated region
    $region9: #{recurrent_gcn1_rollout.1} parent=5 // pred_check
      _
    $region10: #{recurrent_gcn1_rollout.1} parent=5 // pred_check_branch
      %94 = sbr.rel (%p91) target = $region12
    $region11: #{recurrent_gcn1_rollout.1} parent=5 // pred_region
      %s95 = ssub.s32 %s8, 1
      // Predicated region
      $region13: #{recurrent_gcn1_rollout.1} parent=11 // pred_check
        %p96 = pneg %p55
      $region14: #{recurrent_gcn1_rollout.1} parent=11 // pred_check_branch
        %98 = sbr.rel (%p96) target = $region16
      $region15: #{recurrent_gcn1_rollout.1} parent=11 // pred_region
        _
      $region16: #{recurrent_gcn1_rollout.1} parent=11 // pred_fallthru
        _
    $region12: #{recurrent_gcn1_rollout.1} parent=5 // pred_fallthru
      _
    %p99 = scmp.lt.s32.totalorder %s8, 8
    // Predicated region
    $region17: #{recurrent_gcn1_rollout.1} parent=5 // pred_check
      %p100 = pneg %p99
    $region18: #{recurrent_gcn1_rollout.1} parent=5 // pred_check_branch
      %102 = sbr.rel (%p100) target = $region20
    $region19: #{recurrent_gcn1_rollout.1} parent=5 // pred_region
      // Predicated region
      $region21: #{recurrent_gcn1_rollout.1} parent=19 // pred_check
        %p103 = pneg %p28
      $region22: #{recurrent_gcn1_rollout.1} parent=19 // pred_check_branch
        %105 = sbr.rel (%p103) target = $region24
      $region23: #{recurrent_gcn1_rollout.1} parent=19 // pred_region
        %p106 = scmp.lt.s32.totalorder %s8, 7
        %s107 = scalar_select %p106, %s8, 7
        %s108 = smul.addr %s107, 3
        %s109 = smul.addr %s108, 8
        %s110 = scalar_lea.vmem %s0, %s109
      $region24: #{recurrent_gcn1_rollout.1} parent=19 // pred_fallthru
        _
    $region20: #{recurrent_gcn1_rollout.1} parent=5 // pred_fallthru
      _
    %p111 = scmp.le.s32.totalorder 1, %s8
    %p112 = scmp.lt.s32.totalorder %s8, 9
    %p113 = pnand %p111, %p112
    %p114 = pneg %p113
    // Predicated region
    $region25: #{recurrent_gcn1_rollout.1} parent=5 // pred_check
      _
    $region26: #{recurrent_gcn1_rollout.1} parent=5 // pred_check_branch
      %116 = sbr.rel (%p113) target = $region28
    $region27: #{recurrent_gcn1_rollout.1} parent=5 // pred_region
      %s117 = ssub.s32 %s8, 1
      %p118 = scmp.lt.s32.totalorder %s13, 7
      %s119 = scalar_select %p118, %s13, 7
      %s120 = smul.addr %s119, 3
      %s121 = smul.addr %s120, 8
      %s122 = scalar_lea.vmem %s0, %s121
      %p123 = pneg %p34
      %p124 = pneg %p31
      %p125 = pneg %p55
      %p126 = pneg %p52
      %p127 = pneg %p81
      %p128 = pneg %p78
      %p129 = scmp.lt.s32.totalorder %s13, 7
      %s130 = scalar_select %p129, %s13, 7
      %s131 = smul.addr %s130, 2
      %s132 = smul.addr %s131, 8
      %s133 = scalar_lea.vmem %s2, %s132
      %p134 = scmp.lt.s32.totalorder %s13, 7
      %s135 = scalar_select %p134, %s13, 7
      %s136 = smul.addr %s135, 3
      %s137 = smul.addr %s136, 8
      %s138 = scalar_lea.vmem %s0, %s137
      %p139 = scmp.lt.s32.totalorder %s13, 7
      %s140 = scalar_select %p139, %s13, 7
      %s141 = smul.addr %s140, 2
      %s142 = smul.addr %s141, 8
      %s143 = scalar_lea.vmem %s2, %s142
      %v144 = vld [vmem:[%s1] sm:$0xff]
      %v145 = vld [vmem:[%s1 + $0x8] sm:$0xff]
      %v146 = vld [vmem:[%s1 + $0x10] sm:$0xff]
      %v147 = vld [vmem:[%s1 + $0x18] sm:$0xf]
      %p148 = scmp.eq.s32.totalorder %s13, 0
      // Predicated region
      $region29: #{recurrent_gcn1_rollout.1} parent=27 // pred_check
        %p149 = pneg %p148
      $region30: #{recurrent_gcn1_rollout.1} parent=27 // pred_check_branch
        %151 = sbr.rel (%p149) target = $region32
      $region31: #{recurrent_gcn1_rollout.1} parent=27 // pred_region
        %vm152 = vcmask 64513
        %153 = vst.msk [vmem:[#allocation2 + $0x7] sm:$0xfe] %vm152, %v145
        %vm154 = vcmask 57344
        %155 = vst.msk [vmem:[#allocation2 + $0xf] sm:$0x1] %vm154, %v146
      $region32: #{recurrent_gcn1_rollout.1} parent=27 // pred_fallthru
        _
      %v156 = vld [vmem:[%s138] sm:$0xff]
      %v157 = vld [vmem:[%s138 + $0x8] sm:$0xff]
      %v158 = vld [vmem:[%s138 + $0x10] sm:$0xff]
      %vm159 = vcmask 64512
      %160 = vst.msk [vmem:[#allocation2] sm:$0xff] %vm159, %v156
      %v161 = vld [vmem:[#allocation2] sm:$0xff]
      %v162 = vld [vmem:[#allocation2 + $0x8] sm:$0xff]
      %v164 = vsel %vm159, %v161, 0
      %v167 = vsel %vm159, %v162, 0
      %169 = vmatprep.subr.mxu0 0.0
      %170 = vmatpush1.msra.mxu0 %v144
      %171 = vmatprep.subr.mxu0 0.0
      %172 = vmatpush1.msra.mxu0 0.0
      %173 = vmatprep.subr.mxu0 0.0
      %174 = vmatpush1.msra.mxu0 0.0
      %175 = vmatprep.subr.mxu0 0.0
      %176 = vmatpush1.msra.mxu0 0.0
      %177 = vmatprep.subr.mxu0 0.0
      %178 = vmatpush1.msra.mxu0 0.0
      %179 = vmatprep.subr.mxu0 0.0
      %180 = vmatpush1.msra.mxu0 0.0
      %181 = vmatprep.subr.mxu0 0.0
      %182 = vmatpush1.msra.mxu0 0.0
      %183 = vmatprep.subr.mxu0 0.0
      %184 = vmatpush1.msra.mxu0 0.0
      %185 = vmatprep.subr.mxu0 0.0
      %186 = vmatpush1.msra.mxu0 0.0
      %187 = vmatprep.subr.mxu0 0.0
      %188 = vmatpush1.msra.mxu0 0.0
      %189 = vmatprep.subr.mxu0 0.0
      %190 = vmatpush1.msra.mxu0 0.0
      %191 = vmatprep.subr.mxu0 0.0
      %192 = vmatpush1.msra.mxu0 0.0
      %193 = vmatprep.subr.mxu0 0.0
      %194 = vmatpush1.msra.mxu0 0.0
      %195 = vmatprep.subr.mxu0 0.0
      %196 = vmatpush1.msra.mxu0 0.0
      %197 = vmatprep.subr.mxu0 0.0
      %198 = vmatpush1.msra.mxu0 0.0
      %199 = vmatprep.subr.mxu0 0.0
      %200 = vmatpush1.msra.mxu0 0.0
      %201 = vmatprep.subr.mxu0 0.0
      %202 = vmatpush1.msra.mxu0 0.0
      %203 = vmatprep.subr.mxu0 0.0
      %204 = vmatpush1.msra.mxu0 0.0
      %205 = vmatprep.subr.mxu0 0.0
      %206 = vmatpush1.msra.mxu0 0.0
      %207 = vmatprep.subr.mxu0 0.0
      %208 = vmatpush1.msra.mxu0 0.0
      %209 = vmatprep.subr.mxu0 0.0
      %210 = vmatpush1.msra.mxu0 0.0
      %211 = vmatprep.subr.mxu0 0.0
      %212 = vmatpush1.msra.mxu0 0.0
      %213 = vmatprep.subr.mxu0 0.0
      %214 = vmatpush1.msra.mxu0 0.0
      %215 = vmatprep.subr.mxu0 0.0
      %216 = vmatpush1.msra.mxu0 0.0
      %217 = vmatprep.subr.mxu0 0.0
      %218 = vmatpush1.msra.mxu0 0.0
      %219 = vmatprep.subr.mxu0 0.0
      %220 = vmatpush1.msra.mxu0 0.0
      %221 = vmatprep.subr.mxu0 0.0
      %222 = vmatpush1.msra.mxu0 0.0
      %223 = vmatprep.subr.mxu0 0.0
      %224 = vmatpush1.msra.mxu0 0.0
      %225 = vmatprep.subr.mxu0 0.0
      %226 = vmatpush1.msra.mxu0 0.0
      %227 = vmatprep.subr.mxu0 0.0
      %228 = vmatpush1.msra.mxu0 0.0
      %229 = vmatprep.subr.mxu0 0.0
      %230 = vmatpush1.msra.mxu0 0.0
      %231 = vmatprep.subr.mxu0 0.0
      %232 = vmatpush1.msra.mxu0 0.0
      %233 = vmatprep.mubr.f32.mxu0 0.0
      %234 = vmatmul.mubr.f32.gmra.mrb[0].mxu0 %v164
      %v235 = vpop.f32.mrb[0].mxu0
      %v236 = vadd.f32 0.0, %v235
      %v237 = vpop.f32.mrb[0].mxu0
      %238 = vmatprep.mubr.f32.mxu0 0.0
      %239 = vmatmul.mubr.f32.gmra.mrb[0].mxu0 %v167
      %v240 = vpop.f32.mrb[0].mxu0
      %v241 = vadd.f32 0.0, %v240
      %v242 = vpop.f32.mrb[0].mxu0
      %243 = vdwg.mxu0
      %245 = vrot.lane.b32.xlu0 %v241, 104
      %v246 = vpop.permute.xlu0 %245
      %v248 = vadd.f32 %v236, %v246
      %v249 = vlaneseq
      %v250 = vshrl.u32 %v249, 7
      %v251 = vsub.s32 0, %v250
      %v252 = vrot.slane %v145, %v251
      %v253 = vadd.f32 %v248, %v252
      %v254 = vxor.u32 %v253, 2147483648
      %v255 = vmul.f32 %v254, 1.442695
      %v256 = vpow.pop %v255
      %v257 = vadd.f32 %v256, 1.0
      %v258 = vrcp.pop %v257
      %v259 = vmul.f32 1.0, %v258
      %v260 = vadd.f32 %v236, %v252
      %262 = vrot.lane.b32.xlu0 %v252, 16
      %v263 = vpop.permute.xlu0 %262
      %v265 = vadd.f32 %v241, %v263
      %267 = vrot.lane.b32.xlu0 %v265, 88
      %v268 = vpop.permute.xlu0 %267
      %v270 = vmul.f32 %v259, %v268
      %272 = vrot.lane.b32.xlu0 %v270, 16
      %v273 = vpop.permute.xlu0 %272
      %v275 = vadd.f32 %v260, %v273
      %v276 = vtanh.pop %v275
      %v277 = vsub.f32 1.0, %v259
      %279 = vrot.lane.b32.xlu0 %v276, 120
      %v280 = vpop.permute.xlu0 %279
      %v282 = vmul.f32 %v277, %v280
      %283 = vrot.lane.b32.xlu0 %v162, 8
      %v284 = vpop.permute.xlu0 %283
      %v286 = vmul.f32 %v259, %v284
      %v287 = vadd.f32 %v282, %v286
      %289 = vrot.lane.b32.xlu0 %v287, 120
      %v290 = vpop.permute.xlu0 %289
      %292 = vst.msk [vmem:[#allocation2 + $0x8] sm:$0xff] %vm159, %v290
      %vm295 = vcmask 1046528
      %v296 = vrot.slane %v146, 1
      %v297 = vrot.slane %v147, 1
      %v298 = vsel %vm295, %v296, %v297
      %v300 = vsel %vm159, %v290, 0
      %302 = vmatprep.subr.mxu0 0.0
      %303 = vmatpush1.msra.mxu0 %v298
      %304 = vmatprep.subr.mxu0 0.0
      %305 = vmatpush1.msra.mxu0 0.0
      %306 = vmatprep.subr.mxu0 0.0
      %307 = vmatpush1.msra.mxu0 0.0
      %308 = vmatprep.subr.mxu0 0.0
      %309 = vmatpush1.msra.mxu0 0.0
      %310 = vmatprep.subr.mxu0 0.0
      %311 = vmatpush1.msra.mxu0 0.0
      %312 = vmatprep.subr.mxu0 0.0
      %313 = vmatpush1.msra.mxu0 0.0
      %314 = vmatprep.subr.mxu0 0.0
      %315 = vmatpush1.msra.mxu0 0.0
      %316 = vmatprep.subr.mxu0 0.0
      %317 = vmatpush1.msra.mxu0 0.0
      %318 = vmatprep.subr.mxu0 0.0
      %319 = vmatpush1.msra.mxu0 0.0
      %320 = vmatprep.subr.mxu0 0.0
      %321 = vmatpush1.msra.mxu0 0.0
      %322 = vmatprep.subr.mxu0 0.0
      %323 = vmatpush1.msra.mxu0 0.0
      %324 = vmatprep.subr.mxu0 0.0
      %325 = vmatpush1.msra.mxu0 0.0
      %326 = vmatprep.subr.mxu0 0.0
      %327 = vmatpush1.msra.mxu0 0.0
      %328 = vmatprep.subr.mxu0 0.0
      %329 = vmatpush1.msra.mxu0 0.0
      %330 = vmatprep.subr.mxu0 0.0
      %331 = vmatpush1.msra.mxu0 0.0
      %332 = vmatprep.subr.mxu0 0.0
      %333 = vmatpush1.msra.mxu0 0.0
      %334 = vmatprep.subr.mxu0 0.0
      %335 = vmatpush1.msra.mxu0 0.0
      %336 = vmatprep.subr.mxu0 0.0
      %337 = vmatpush1.msra.mxu0 0.0
      %338 = vmatprep.subr.mxu0 0.0
      %339 = vmatpush1.msra.mxu0 0.0
      %340 = vmatprep.subr.mxu0 0.0
      %341 = vmatpush1.msra.mxu0 0.0
      %342 = vmatprep.subr.mxu0 0.0
      %343 = vmatpush1.msra.mxu0 0.0
      %344 = vmatprep.subr.mxu0 0.0
      %345 = vmatpush1.msra.mxu0 0.0
      %346 = vmatprep.subr.mxu0 0.0
      %347 = vmatpush1.msra.mxu0 0.0
      %348 = vmatprep.subr.mxu0 0.0
      %349 = vmatpush1.msra.mxu0 0.0
      %350 = vmatprep.subr.mxu0 0.0
      %351 = vmatpush1.msra.mxu0 0.0
      %352 = vmatprep.subr.mxu0 0.0
      %353 = vmatpush1.msra.mxu0 0.0
      %354 = vmatprep.subr.mxu0 0.0
      %355 = vmatpush1.msra.mxu0 0.0
      %356 = vmatprep.subr.mxu0 0.0
      %357 = vmatpush1.msra.mxu0 0.0
      %358 = vmatprep.subr.mxu0 0.0
      %359 = vmatpush1.msra.mxu0 0.0
      %360 = vmatprep.subr.mxu0 0.0
      %361 = vmatpush1.msra.mxu0 0.0
      %362 = vmatprep.subr.mxu0 0.0
      %363 = vmatpush1.msra.mxu0 0.0
      %364 = vmatprep.subr.mxu0 0.0
      %365 = vmatpush1.msra.mxu0 0.0
      %366 = vmatprep.mubr.f32.mxu0 0.0
      %367 = vmatmul.mubr.f32.gmra.mrb[0].mxu0 %v300
      %v368 = vpop.f32.mrb[0].mxu0
      %v369 = vadd.f32 0.0, %v368
      %v370 = vpop.f32.mrb[0].mxu0
      %371 = vdwg.mxu0
      %v372 = vlaneseq
      %v373 = vshrl.u32 %v372, 7
      %v374 = vsub.s32 1, %v373
      %v375 = vrot.slane %v147, %v374
      %v377 = vsel %vm159, %v157, 0
      %v380 = vsel %vm159, %v158, 0
      %382 = vmatprep.subr.mxu0 0.0
      %383 = vmatpush1.msra.mxu0 %v369
      %384 = vmatprep.subr.mxu0 0.0
      %385 = vmatpush1.msra.mxu0 0.0
      %386 = vmatprep.subr.mxu0 0.0
      %387 = vmatpush1.msra.mxu0 0.0
      %388 = vmatprep.subr.mxu0 0.0
      %389 = vmatpush1.msra.mxu0 0.0
      %390 = vmatprep.subr.mxu0 0.0
      %391 = vmatpush1.msra.mxu0 0.0
      %392 = vmatprep.subr.mxu0 0.0
      %393 = vmatpush1.msra.mxu0 0.0
      %394 = vmatprep.subr.mxu0 0.0
      %395 = vmatpush1.msra.mxu0 0.0
      %396 = vmatprep.subr.mxu0 0.0
      %397 = vmatpush1.msra.mxu0 0.0
      %398 = vmatprep.subr.mxu0 0.0
      %399 = vmatpush1.msra.mxu0 0.0
      %400 = vmatprep.subr.mxu0 0.0
      %401 = vmatpush1.msra.mxu0 0.0
      %402 = vmatprep.subr.mxu0 0.0
      %403 = vmatpush1.msra.mxu0 0.0
      %404 = vmatprep.subr.mxu0 0.0
      %405 = vmatpush1.msra.mxu0 0.0
      %406 = vmatprep.subr.mxu0 0.0
      %407 = vmatpush1.msra.mxu0 0.0
      %408 = vmatprep.subr.mxu0 0.0
      %409 = vmatpush1.msra.mxu0 0.0
      %410 = vmatprep.subr.mxu0 0.0
      %411 = vmatpush1.msra.mxu0 0.0
      %412 = vmatprep.subr.mxu0 0.0
      %413 = vmatpush1.msra.mxu0 0.0
      %414 = vmatprep.subr.mxu0 0.0
      %415 = vmatpush1.msra.mxu0 0.0
      %416 = vmatprep.subr.mxu0 0.0
      %417 = vmatpush1.msra.mxu0 0.0
      %418 = vmatprep.subr.mxu0 0.0
      %419 = vmatpush1.msra.mxu0 0.0
      %420 = vmatprep.subr.mxu0 0.0
      %421 = vmatpush1.msra.mxu0 0.0
      %422 = vmatprep.subr.mxu0 0.0
      %423 = vmatpush1.msra.mxu0 0.0
      %424 = vmatprep.subr.mxu0 0.0
      %425 = vmatpush1.msra.mxu0 0.0
      %426 = vmatprep.subr.mxu0 0.0
      %427 = vmatpush1.msra.mxu0 0.0
      %428 = vmatprep.subr.mxu0 0.0
      %429 = vmatpush1.msra.mxu0 0.0
      %430 = vmatprep.subr.mxu0 0.0
      %431 = vmatpush1.msra.mxu0 0.0
      %432 = vmatprep.subr.mxu0 0.0
      %433 = vmatpush1.msra.mxu0 0.0
      %434 = vmatprep.subr.mxu0 0.0
      %435 = vmatpush1.msra.mxu0 0.0
      %436 = vmatprep.subr.mxu0 0.0
      %437 = vmatpush1.msra.mxu0 0.0
      %438 = vmatprep.subr.mxu0 0.0
      %439 = vmatpush1.msra.mxu0 0.0
      %440 = vmatprep.subr.mxu0 0.0
      %441 = vmatpush1.msra.mxu0 0.0
      %442 = vmatprep.subr.mxu0 0.0
      %443 = vmatpush1.msra.mxu0 0.0
      %444 = vmatprep.subr.mxu0 0.0
      %445 = vmatpush1.msra.mxu0 0.0
      %446 = vmatprep.mubr.f32.mxu0 0.0
      %447 = vmatmul.mubr.f32.gmra.mrb[0].mxu0 %v377
      %v448 = vpop.f32.mrb[0].mxu0
      %v449 = vadd.f32 %v375, %v448
      %v450 = vpop.f32.mrb[0].mxu0
      %451 = vmatprep.mubr.f32.mxu0 0.0
      %452 = vmatmul.mubr.f32.gmra.mrb[0].mxu0 %v380
      %v453 = vpop.f32.mrb[0].mxu0
      %v454 = vadd.f32 %v375, %v453
      %v455 = vpop.f32.mrb[0].mxu0
      %456 = vdwg.mxu0
      %v457 = vtanh.pop %v449
      %v458 = vtanh.pop %v454
      %v459 = vlaneseq
      %v460 = vshrl.u32 %v459, 7
      %v461 = vsub.s32 2, %v460
      %v462 = vrot.slane %v147, %v461
      %v463 = vmul.f32 %v449, %v462
      %v464 = vmul.f32 %v454, %v462
      %vm465 = vcmask 31744
      %v466 = vsel %vm465, %v463, 0.0
      %467 = vadd.xlane.f32.xlu0 %v466
      %v468 = vpop.xlane.xlu0 %467
      %v469 = vsel %vm465, %v464, 0.0
      %470 = vadd.xlane.f32.xlu0 %v469
      %v471 = vpop.xlane.xlu0 %470
      %v472 = vlaneseq
      %v473 = vshrl.u32 %v472, 7
      %v474 = vsub.s32 3, %v473
      %v475 = vrot.slane %v147, %v474
      %v476 = vadd.f32 %v468, %v475
      %v477 = vadd.f32 %v471, %v475
      %vm478 = vcmask 7168
      %479 = vst.msk [vmem:[%s143] sm:$0xff] %vm478, %v476
      %480 = vst.msk [vmem:[%s143 + $0x8] sm:$0xff] %vm478, %v477
      %483 = vrot.lane.b32.xlu0 %v457, 1
      %v484 = vpop.permute.xlu0 %483
      %485 = vrot.lane.b32.xlu0 %v458, 1
      %v486 = vpop.permute.xlu0 %485
      %vm489 = vcmask 39944
      %490 = vst.msk [vmem:[%s143] sm:$0xff] %vm489, %v484
      %491 = vst.msk [vmem:[%s143 + $0x8] sm:$0xff] %vm489, %v486
      %vm492 = vcmask 64552
      %493 = vst.msk [vmem:[%s143] sm:$0xff] %vm492, 0.0
      %494 = vst.msk [vmem:[%s143 + $0x8] sm:$0xff] %vm492, 0.0
      %p495 = scmp.lt.s32.totalorder %s13, 7
      %s496 = scalar_select %p495, %s13, 7
      %s497 = smul.addr %s496, 2
      %s498 = smul.addr %s497, 8
      %s499 = scalar_lea.vmem %s2, %s498
      // Predicated region
      $region33: #{recurrent_gcn1_rollout.1} parent=27 // pred_check
        %p500 = pneg %p78
      $region34: #{recurrent_gcn1_rollout.1} parent=27 // pred_check_branch
        %502 = sbr.rel (%p500) target = $region36
      $region35: #{recurrent_gcn1_rollout.1} parent=27 // pred_region
        _
      $region36: #{recurrent_gcn1_rollout.1} parent=27 // pred_fallthru
        _
    $region28: #{recurrent_gcn1_rollout.1} parent=5 // pred_fallthru
      _
    %p503 = scmp.le.s32.totalorder 2, %s8
    // Predicated region
    $region37: #{recurrent_gcn1_rollout.1} parent=5 // pred_check
      %p504 = pneg %p503
    $region38: #{recurrent_gcn1_rollout.1} parent=5 // pred_check_branch
      %506 = sbr.rel (%p504) target = $region40
    $region39: #{recurrent_gcn1_rollout.1} parent=5 // pred_region
      %s507 = ssub.s32 %s8, 2
      // Predicated region
      $region41: #{recurrent_gcn1_rollout.1} parent=39 // pred_check
        %p508 = pneg %p84
      $region42: #{recurrent_gcn1_rollout.1} parent=39 // pred_check_branch
        %510 = sbr.rel (%p508) target = $region44
      $region43: #{recurrent_gcn1_rollout.1} parent=39 // pred_region
        %p511 = scmp.lt.s32.totalorder %s14, 7
        %s512 = scalar_select %p511, %s14, 7
        %s513 = smul.addr %s512, 2
        %s514 = smul.addr %s513, 8
        %s515 = scalar_lea.vmem %s2, %s514
      $region44: #{recurrent_gcn1_rollout.1} parent=39 // pred_fallthru
        _
    $region40: #{recurrent_gcn1_rollout.1} parent=5 // pred_fallthru
      _
  $region6: #{recurrent_gcn1_rollout.1} parent=0 // loop_footer
    %s12 = sadd.s32 1, %s8
  $region7: #{recurrent_gcn1_rollout.1} parent=0 // loop_footer_branch
    %7 = sbr.rel target = $region3
  $region8: #{recurrent_gcn1_rollout.1} parent=0 // loop_exit
    _

</llo_original>
